<compile_context>
chip_gen: v7x
topology: tpu7x:2x2x1
jax: 0.10.0
libtpu: 0.0.40
codegen_flags: <defaults>
</compile_context>

<pallas_src>
import functools

import jax
import jax.numpy as jnp
from jax.experimental import pallas as pl
from jax.experimental.pallas import tpu as pltpu

_LANE = 128


# ----------------------------------------------------------------------------
# small helpers (host-side layout plumbing)
# ----------------------------------------------------------------------------
def _round_up(n, m):
    return ((n + m - 1) // m) * m


def _pad_axis(x, axis, target):
    pad = target - x.shape[axis]
    if pad == 0:
        return x
    widths = [(0, 0)] * x.ndim
    widths[axis] = (0, pad)
    return jnp.pad(x, widths)


def _pick_batch_tile(batch, cap=512):
    """Batch tile: a multiple-of-8 divisor of B, <= cap.

    Prefers >= 2 tiles (v7x megacore shards the 'parallel' axis over its two
    TensorCores) while still taking the largest such tile to amortize the
    ~0.35us per-grid-step overhead on single-TC v5e/v6e.  Falls back to the
    full batch (always a legal block) when no aligned divisor exists.
    """
    if batch % 8 != 0 or batch <= 8:
        return batch
    candidates = [t for t in range(8, min(cap, batch) + 1, 8) if batch % t == 0]
    if not candidates:
        return batch
    multi = [t for t in candidates if batch // t >= 2]
    return max(multi) if multi else max(candidates)


def _nbytes(shape, dtype):
    n = 1
    for d in shape:
        n *= int(d)
    return n * jnp.dtype(dtype).itemsize


# ----------------------------------------------------------------------------
# in-kernel exact GELU (PyTorch nn.GELU default is approximate='none' / erf)
# ----------------------------------------------------------------------------
def _erf(x):
    # Abramowitz & Stegun 7.1.26 rational approximation, |err| < 1.5e-7.
    # abs/exp/recip/mul/add/where only -> lowers on every TPU generation.
    # The divide goes to the EUP slot via pl.reciprocal(approx=True), nearly
    # free alongside the exp.
    a1, a2, a3, a4, a5 = 0.254829592, -0.284496736, 1.421413741, -1.453152027, 1.061405429
    p = 0.3275911
    ax = jnp.abs(x)
    t = pl.reciprocal(1.0 + p * ax, approx=True)
    poly = ((((a5 * t + a4) * t + a3) * t + a2) * t + a1) * t
    y = 1.0 - poly * jnp.exp(-ax * ax)
    return jnp.where(x < 0.0, -y, y)


def _gelu_exact(x):
    return 0.5 * x * (1.0 + _erf(x * 0.7071067811865475))


# ----------------------------------------------------------------------------
# fused kernel: all scales + CLS/MLP head + mean over scales, one grid step
# per batch tile (no accumulator, no output revisit)
# ----------------------------------------------------------------------------
def _fused_scales_kernel(feat_ref, wf_ref, bf_ref, w2_ref, b2_ref, out_ref,
                         *, num_scales):
    """grid = (batch_tiles,).

    feat_ref : [S, TB, Pp] bf16  per-scale patch-token means (this batch tile)
    wf_ref   : [Pp, Hp]    bf16  fused (We @ W1) weight          (VMEM resident)
    bf_ref   : [1,  Hp]    f32   fused (be + cls) @ W1 + b1 bias
    w2_ref   : [Hp, Kp]    bf16  MLP output weight
    b2_ref   : [1,  Kp]    f32   MLP output bias
    out_ref  : [TB, Kp]    f32   mean-over-scales prediction (single store)
    """
    g_sum = None
    for s in range(num_scales):                       # static unroll over scales
        h = jnp.dot(feat_ref[s], wf_ref[...],
                    preferred_element_type=jnp.float32) + bf_ref[...]
        g = _gelu_exact(h)                            # f32 elementwise chain
        g_sum = g if g_sum is None else g_sum + g

    # mean over scales commutes with the linear output projection -> reduce
    # first, then run the W2 matmul once per batch tile instead of per scale.
    gm = g_sum * (1.0 / num_scales)
    out_ref[...] = jnp.dot(gm.astype(w2_ref.dtype), w2_ref[...],
                           preferred_element_type=jnp.float32) + b2_ref[...]


def _fused_forward(feats, wf, bf, w2, b2, num_classes):
    """feats: [S, B, Pp] bf16 (padded).  Returns [B, num_classes] f32."""
    S, B, Pp = feats.shape
    Hp = wf.shape[1]
    Kp = w2.shape[1]

    tb = _pick_batch_tile(B)
    grid = (B // tb,)

    def const(shape):
        # Constant index_map -> block stays resident in VMEM across all tiles.
        # TODO(synk): pipeline_mode=pl.Buffered(1) would single-buffer these
        # resident weights (halves their VMEM) once verified on this toolchain.
        return pl.BlockSpec(shape, lambda b: (0, 0))

    # Explicit scoped-VMEM budget (review): v5e defaults to 16 MiB scoped and
    # v7x has only 64 MiB physical, so set a limit from the actual working set
    # once it outgrows the smallest default, capped under v7x physical.
    work = (_nbytes((S, tb, Pp), jnp.bfloat16) + _nbytes((tb, Kp), jnp.float32)
            + _nbytes(wf.shape, wf.dtype) + _nbytes(bf.shape, bf.dtype)
            + _nbytes(w2.shape, w2.dtype) + _nbytes(b2.shape, b2.dtype))
    need = 2 * work + (1 << 20)                    # double-buffered + slack
    vmem_limit = None if need <= (16 << 20) else min(need, 60 << 20)

    kernel = functools.partial(_fused_scales_kernel, num_scales=S)

    out = pl.pallas_call(
        kernel,
        out_shape=jax.ShapeDtypeStruct((B, Kp), jnp.float32),
        grid=grid,
        in_specs=[
            # this batch tile's token-means for ALL scales in one block
            pl.BlockSpec((S, tb, Pp), lambda b: (0, b, 0)),
            const((Pp, Hp)),    # wf  (We @ W1)
            const((1, Hp)),     # bf  ((be+cls) @ W1 + b1)
            const((Hp, Kp)),    # w2
            const((1, Kp)),     # b2
        ],
        out_specs=pl.BlockSpec((tb, Kp), lambda b: (b, 0)),
        compiler_params=pltpu.CompilerParams(
            dimension_semantics=("parallel",),     # batch tiles independent
            vmem_limit_bytes=vmem_limit,
        ),
    )(feats, wf, bf, w2, b2)

    return out[:, :num_classes]


# ----------------------------------------------------------------------------
# wrapper-side glue: hierarchical avg-pool, patch-token mean, affine hoists,
# padding, dtype casts
# ----------------------------------------------------------------------------
def _avg_pool(img, scale):
    # img: [B, C, H, W] NCHW, non-overlapping avg pool with kernel=stride=scale
    if scale == 1:
        return img
    B, C, H, W = img.shape
    return img.reshape(B, C, H // scale, scale, W // scale, scale).mean(axis=(3, 5))


def _pooled_images(img, scale_list):
    """Hierarchical avg-pool: derive each coarser scale from the closest finer
    already-pooled image (exact for nested means of equal-size blocks), so the
    full-resolution image is read from HBM ~once instead of once per scale."""
    cache = {1: img}
    outs = []
    for s in scale_list:
        if s not in cache:
            base = max(d for d in cache if s % d == 0)
            cache[s] = _avg_pool(cache[base], s // base)
        outs.append(cache[s])
    return outs


def _patch_token_mean(img, patch):
    # Equivalent to mean(patchify(img), axis=tokens): [B, C, Hs, Ws] -> [B, C*p*p]
    B, C, Hs, Ws = img.shape
    x = img.reshape(B, C, Hs // patch, patch, Ws // patch, patch)
    x = x.mean(axis=(2, 4))                   # mean over the patch grid
    return x.reshape(B, C * patch * patch)    # (c, pr, pc) order == patchify


def mono_modal_multiscale_forward(x, params, scales, *, patch=2, omni=True):
    """Mirror of MonoModalMulitScale.forward for a dict input x."""
    # TODO(synk): only the omni=True (class-token) branch is implemented; the
    # omni=False branch would run the MLP over the full token sequence.
    assert omni
    img = x["image"]
    scale_list = scales[x["dataset"]]

    # Front-end hoist (valid ONLY because the patch embedding + class-token
    # add is strictly affine before the MLP's GELU): the class token needs
    # just the *mean* of the embedded patch tokens, so feed the kernel one
    # [B, P] token-mean per scale instead of [B, Np, D] token stacks.
    feats = jnp.stack(
        [_patch_token_mean(p, patch) for p in _pooled_images(img, scale_list)],
        axis=0)                                                     # [S, B, P]

    # Affine hoist of the first two linear layers: fold We into W1 on the host
    # (f32 product, bf16 for the MXU) and fuse be/cls/b1 into one bias.
    # Biggest win when P <= D (true for small patch sizes, as here).
    wf = params["we"] @ params["w1"]                                    # [P, H]
    bf = (params["be"] + params["cls"]) @ params["w1"] + params["b1"]   # [1, H]

    P, H = wf.shape
    K = params["w2"].shape[1]
    Pp, Hp, Kp = (_round_up(v, _LANE) for v in (P, H, K))

    # Lane-dense padding so matmuls and the output store run unmasked.
    feats = _pad_axis(feats, 2, Pp).astype(jnp.bfloat16)
    wf = _pad_axis(_pad_axis(wf, 0, Pp), 1, Hp).astype(jnp.bfloat16)
    bf = _pad_axis(bf, 1, Hp).astype(jnp.float32)
    w2 = _pad_axis(_pad_axis(params["w2"], 0, Hp), 1, Kp).astype(jnp.bfloat16)
    b2 = _pad_axis(params["b2"], 1, Kp).astype(jnp.float32)

    return _fused_forward(feats, wf, bf, w2, b2, num_classes=K)


# ----------------------------------------------------------------------------
# pure-JAX reference (unfused, f32) for a correctness check
# ----------------------------------------------------------------------------
def _reference_forward(x, params, scales, *, patch=2):
    img = x["image"]
    outs = []
    for s in scales[x["dataset"]]:
        pooled = _avg_pool(img, s)
        B, C, Hs, Ws = pooled.shape
        xr = pooled.reshape(B, C, Hs // patch, patch, Ws // patch, patch)
        xr = xr.transpose(0, 2, 4, 1, 3, 5).reshape(B, -1, C * patch * patch)
        tok = xr @ params["we"] + params["be"]
        cls = params["cls"] + tok.mean(axis=1)
        h = cls @ params["w1"] + params["b1"]
        h = 0.5 * h * (1.0 + jax.scipy.special.erf(h / jnp.sqrt(2.0)))
        outs.append(h @ params["w2"] + params["b2"])
    return jnp.stack(outs, axis=0).mean(axis=0)


# ----------------------------------------------------------------------------
# Deterministic parameter init + demo
# ----------------------------------------------------------------------------
def _init_params(key, *, in_ch, patch, dim, hidden, num_classes):
    P = in_ch * patch * patch
    k = jax.random.split(key, 7)
    return {
        "we":  jax.random.normal(k[0], (P, dim), jnp.float32) * 0.1,
        "be":  jax.random.normal(k[1], (1, dim), jnp.float32) * 0.05,
        "cls": jax.random.normal(k[2], (1, dim), jnp.float32) * 0.05,
        "w1":  jax.random.normal(k[3], (dim, hidden), jnp.float32) * 0.1,
        "b1":  jax.random.normal(k[4], (1, hidden), jnp.float32) * 0.05,
        "w2":  jax.random.normal(k[5], (hidden, num_classes), jnp.float32) * 0.1,
        "b2":  jax.random.normal(k[6], (1, num_classes), jnp.float32) * 0.05,
    }


if __name__ == "__main__":
    key = jax.random.PRNGKey(0)
    k_img, k_par = jax.random.split(key)

    B, C, H, W = 2, 4, 16, 16
    patch, dim, hidden, num_classes = 2, 32, 32, 8
    scales = {"demo": [1, 2]}                       # per-dataset scale list

    img = jax.random.normal(k_img, (B, C, H, W), jnp.float32)
    params = _init_params(k_par, in_ch=C, patch=patch, dim=dim,
                          hidden=hidden, num_classes=num_classes)

    x = {"image": img, "dataset": "demo"}
    out = mono_modal_multiscale_forward(x, params, scales, patch=patch, omni=True)
    out = jax.block_until_ready(out)
    assert out.shape == (B, num_classes) and out.dtype == jnp.float32

    # Loose tolerance: kernel uses bf16 matmul operands (f32 accumulation),
    # host-side fused We@W1 weight, and an erf approximation (|err|<=1.5e-7).
    ref = _reference_forward(x, params, scales, patch=patch)
    assert jnp.allclose(out, ref, atol=1e-2, rtol=1e-1), (out, ref)

    print("KERNEL_OK")
</pallas_src>

<mosaic_0001>
module attributes {stable_mosaic.version = 11 : i64} {
  func.func @_fused_scales_kernel(%arg0: i32, %arg1: memref<2x2x128xbf16, #tpu.memory_space<vmem>>, %arg2: memref<128x128xbf16, #tpu.memory_space<vmem>>, %arg3: memref<1x128xf32, #tpu.memory_space<vmem>>, %arg4: memref<128x128xbf16, #tpu.memory_space<vmem>>, %arg5: memref<1x128xf32, #tpu.memory_space<vmem>>, %arg6: memref<2x128xf32, #tpu.memory_space<vmem>>) attributes {dimension_semantics = [#tpu.dimension_semantics<parallel>], iteration_bounds = array<i64: 1>, scalar_prefetch = 0 : i64, scratch_operands = 0 : i64, tpu.core_type = #tpu.core_type<tc>, window_params = [{transform_indices = @transform_0, window_bounds = array<i64: 2, 2, 128>}, {pipeline_mode = #tpu.pipeline_mode<synchronous>, transform_indices = @transform_1, window_bounds = array<i64: 128, 128>}, {pipeline_mode = #tpu.pipeline_mode<synchronous>, transform_indices = @transform_2, window_bounds = array<i64: 1, 128>}, {pipeline_mode = #tpu.pipeline_mode<synchronous>, transform_indices = @transform_3, window_bounds = array<i64: 128, 128>}, {pipeline_mode = #tpu.pipeline_mode<synchronous>, transform_indices = @transform_4, window_bounds = array<i64: 1, 128>}, {transform_indices = @transform_5, window_bounds = array<i64: 2, 128>}]} {
    %c0 = arith.constant 0 : index
    %c0_0 = arith.constant 0 : index
    %c0_1 = arith.constant 0 : index
    %0 = vector.load %arg1[%c0, %c0_0, %c0_1] : memref<2x2x128xbf16, #tpu.memory_space<vmem>>, vector<1x2x128xbf16>
    %1 = vector.shape_cast %0 : vector<1x2x128xbf16> to vector<2x128xbf16>
    %c0_2 = arith.constant 0 : index
    %c0_3 = arith.constant 0 : index
    %2 = vector.load %arg2[%c0_2, %c0_3] : memref<128x128xbf16, #tpu.memory_space<vmem>>, vector<128x128xbf16>
    %cst = arith.constant dense<0.000000e+00> : vector<2x128xf32>
    %3 = tpu.matmul %1, %2, %cst {dimension_numbers = #tpu.dot_dimension_numbers<[1], [0], [0], [1], [0, 0, 1, 1], [], []>} : vector<2x128xbf16>, vector<128x128xbf16>, vector<2x128xf32> -> vector<2x128xf32>
    %c0_4 = arith.constant 0 : index
    %c0_5 = arith.constant 0 : index
    %4 = vector.load %arg3[%c0_4, %c0_5] : memref<1x128xf32, #tpu.memory_space<vmem>>, vector<1x128xf32>
    %5 = vector.broadcast %4 : vector<1x128xf32> to vector<2x128xf32>
    %6 = arith.addf %3, %5 : vector<2x128xf32>
    %cst_6 = arith.constant 5.000000e-01 : f32
    %7 = vector.broadcast %cst_6 : f32 to vector<2x128xf32>
    %8 = arith.mulf %7, %6 : vector<2x128xf32>
    %cst_7 = arith.constant 0.707106769 : f32
    %9 = vector.broadcast %cst_7 : f32 to vector<2x128xf32>
    %10 = arith.mulf %6, %9 : vector<2x128xf32>
    %11 = math.absf %10 : vector<2x128xf32>
    %cst_8 = arith.constant 0.327591091 : f32
    %12 = vector.broadcast %cst_8 : f32 to vector<2x128xf32>
    %13 = arith.mulf %12, %11 : vector<2x128xf32>
    %cst_9 = arith.constant 1.000000e+00 : f32
    %14 = vector.broadcast %cst_9 : f32 to vector<2x128xf32>
    %15 = arith.addf %14, %13 : vector<2x128xf32>
    %16 = tpu.reciprocal %15 {approx = true} : vector<2x128xf32> -> vector<2x128xf32>
    %cst_10 = arith.constant 1.06140542 : f32
    %17 = vector.broadcast %cst_10 : f32 to vector<2x128xf32>
    %18 = arith.mulf %17, %16 : vector<2x128xf32>
    %cst_11 = arith.constant -1.45315206 : f32
    %19 = vector.broadcast %cst_11 : f32 to vector<2x128xf32>
    %20 = arith.addf %18, %19 : vector<2x128xf32>
    %21 = arith.mulf %20, %16 : vector<2x128xf32>
    %cst_12 = arith.constant 1.42141378 : f32
    %22 = vector.broadcast %cst_12 : f32 to vector<2x128xf32>
    %23 = arith.addf %21, %22 : vector<2x128xf32>
    %24 = arith.mulf %23, %16 : vector<2x128xf32>
    %cst_13 = arith.constant -0.284496725 : f32
    %25 = vector.broadcast %cst_13 : f32 to vector<2x128xf32>
    %26 = arith.addf %24, %25 : vector<2x128xf32>
    %27 = arith.mulf %26, %16 : vector<2x128xf32>
    %cst_14 = arith.constant 0.254829586 : f32
    %28 = vector.broadcast %cst_14 : f32 to vector<2x128xf32>
    %29 = arith.addf %27, %28 : vector<2x128xf32>
    %30 = arith.mulf %29, %16 : vector<2x128xf32>
    %cst_15 = arith.constant 0.000000e+00 : f32
    %31 = vector.broadcast %cst_15 : f32 to vector<2x128xf32>
    %32 = arith.subf %31, %11 : vector<2x128xf32>
    %33 = arith.mulf %32, %11 : vector<2x128xf32>
    %34 = math.exp %33 : vector<2x128xf32>
    %35 = arith.mulf %30, %34 : vector<2x128xf32>
    %cst_16 = arith.constant 1.000000e+00 : f32
    %36 = vector.broadcast %cst_16 : f32 to vector<2x128xf32>
    %37 = arith.subf %36, %35 : vector<2x128xf32>
    %cst_17 = arith.constant 0.000000e+00 : f32
    %38 = vector.broadcast %cst_17 : f32 to vector<2x128xf32>
    %39 = arith.cmpf olt, %10, %38 : vector<2x128xf32>
    %cst_18 = arith.constant 0.000000e+00 : f32
    %40 = vector.broadcast %cst_18 : f32 to vector<2x128xf32>
    %41 = arith.subf %40, %37 : vector<2x128xf32>
    %42 = arith.select %39, %41, %37 : vector<2x128xi1>, vector<2x128xf32>
    %cst_19 = arith.constant 1.000000e+00 : f32
    %43 = vector.broadcast %cst_19 : f32 to vector<2x128xf32>
    %44 = arith.addf %43, %42 : vector<2x128xf32>
    %45 = arith.mulf %8, %44 : vector<2x128xf32>
    %c1 = arith.constant 1 : index
    %c0_20 = arith.constant 0 : index
    %c0_21 = arith.constant 0 : index
    %46 = vector.load %arg1[%c1, %c0_20, %c0_21] : memref<2x2x128xbf16, #tpu.memory_space<vmem>>, vector<1x2x128xbf16>
    %47 = vector.shape_cast %46 : vector<1x2x128xbf16> to vector<2x128xbf16>
    %c0_22 = arith.constant 0 : index
    %c0_23 = arith.constant 0 : index
    %48 = vector.load %arg2[%c0_22, %c0_23] : memref<128x128xbf16, #tpu.memory_space<vmem>>, vector<128x128xbf16>
    %cst_24 = arith.constant dense<0.000000e+00> : vector<2x128xf32>
    %49 = tpu.matmul %47, %48, %cst_24 {dimension_numbers = #tpu.dot_dimension_numbers<[1], [0], [0], [1], [0, 0, 1, 1], [], []>} : vector<2x128xbf16>, vector<128x128xbf16>, vector<2x128xf32> -> vector<2x128xf32>
    %c0_25 = arith.constant 0 : index
    %c0_26 = arith.constant 0 : index
    %50 = vector.load %arg3[%c0_25, %c0_26] : memref<1x128xf32, #tpu.memory_space<vmem>>, vector<1x128xf32>
    %51 = vector.broadcast %50 : vector<1x128xf32> to vector<2x128xf32>
    %52 = arith.addf %49, %51 : vector<2x128xf32>
    %cst_27 = arith.constant 5.000000e-01 : f32
    %53 = vector.broadcast %cst_27 : f32 to vector<2x128xf32>
    %54 = arith.mulf %53, %52 : vector<2x128xf32>
    %cst_28 = arith.constant 0.707106769 : f32
    %55 = vector.broadcast %cst_28 : f32 to vector<2x128xf32>
    %56 = arith.mulf %52, %55 : vector<2x128xf32>
    %57 = math.absf %56 : vector<2x128xf32>
    %cst_29 = arith.constant 0.327591091 : f32
    %58 = vector.broadcast %cst_29 : f32 to vector<2x128xf32>
    %59 = arith.mulf %58, %57 : vector<2x128xf32>
    %cst_30 = arith.constant 1.000000e+00 : f32
    %60 = vector.broadcast %cst_30 : f32 to vector<2x128xf32>
    %61 = arith.addf %60, %59 : vector<2x128xf32>
    %62 = tpu.reciprocal %61 {approx = true} : vector<2x128xf32> -> vector<2x128xf32>
    %cst_31 = arith.constant 1.06140542 : f32
    %63 = vector.broadcast %cst_31 : f32 to vector<2x128xf32>
    %64 = arith.mulf %63, %62 : vector<2x128xf32>
    %cst_32 = arith.constant -1.45315206 : f32
    %65 = vector.broadcast %cst_32 : f32 to vector<2x128xf32>
    %66 = arith.addf %64, %65 : vector<2x128xf32>
    %67 = arith.mulf %66, %62 : vector<2x128xf32>
    %cst_33 = arith.constant 1.42141378 : f32
    %68 = vector.broadcast %cst_33 : f32 to vector<2x128xf32>
    %69 = arith.addf %67, %68 : vector<2x128xf32>
    %70 = arith.mulf %69, %62 : vector<2x128xf32>
    %cst_34 = arith.constant -0.284496725 : f32
    %71 = vector.broadcast %cst_34 : f32 to vector<2x128xf32>
    %72 = arith.addf %70, %71 : vector<2x128xf32>
    %73 = arith.mulf %72, %62 : vector<2x128xf32>
    %cst_35 = arith.constant 0.254829586 : f32
    %74 = vector.broadcast %cst_35 : f32 to vector<2x128xf32>
    %75 = arith.addf %73, %74 : vector<2x128xf32>
    %76 = arith.mulf %75, %62 : vector<2x128xf32>
    %cst_36 = arith.constant 0.000000e+00 : f32
    %77 = vector.broadcast %cst_36 : f32 to vector<2x128xf32>
    %78 = arith.subf %77, %57 : vector<2x128xf32>
    %79 = arith.mulf %78, %57 : vector<2x128xf32>
    %80 = math.exp %79 : vector<2x128xf32>
    %81 = arith.mulf %76, %80 : vector<2x128xf32>
    %cst_37 = arith.constant 1.000000e+00 : f32
    %82 = vector.broadcast %cst_37 : f32 to vector<2x128xf32>
    %83 = arith.subf %82, %81 : vector<2x128xf32>
    %cst_38 = arith.constant 0.000000e+00 : f32
    %84 = vector.broadcast %cst_38 : f32 to vector<2x128xf32>
    %85 = arith.cmpf olt, %56, %84 : vector<2x128xf32>
    %cst_39 = arith.constant 0.000000e+00 : f32
    %86 = vector.broadcast %cst_39 : f32 to vector<2x128xf32>
    %87 = arith.subf %86, %83 : vector<2x128xf32>
    %88 = arith.select %85, %87, %83 : vector<2x128xi1>, vector<2x128xf32>
    %cst_40 = arith.constant 1.000000e+00 : f32
    %89 = vector.broadcast %cst_40 : f32 to vector<2x128xf32>
    %90 = arith.addf %89, %88 : vector<2x128xf32>
    %91 = arith.mulf %54, %90 : vector<2x128xf32>
    %92 = arith.addf %45, %91 : vector<2x128xf32>
    %cst_41 = arith.constant 5.000000e-01 : f32
    %93 = vector.broadcast %cst_41 : f32 to vector<2x128xf32>
    %94 = arith.mulf %92, %93 : vector<2x128xf32>
    %95 = arith.truncf %94 : vector<2x128xf32> to vector<2x128xbf16>
    %c0_42 = arith.constant 0 : index
    %c0_43 = arith.constant 0 : index
    %96 = vector.load %arg4[%c0_42, %c0_43] : memref<128x128xbf16, #tpu.memory_space<vmem>>, vector<128x128xbf16>
    %cst_44 = arith.constant dense<0.000000e+00> : vector<2x128xf32>
    %97 = tpu.matmul %95, %96, %cst_44 {dimension_numbers = #tpu.dot_dimension_numbers<[1], [0], [0], [1], [0, 0, 1, 1], [], []>} : vector<2x128xbf16>, vector<128x128xbf16>, vector<2x128xf32> -> vector<2x128xf32>
    %c0_45 = arith.constant 0 : index
    %c0_46 = arith.constant 0 : index
    %98 = vector.load %arg5[%c0_45, %c0_46] : memref<1x128xf32, #tpu.memory_space<vmem>>, vector<1x128xf32>
    %99 = vector.broadcast %98 : vector<1x128xf32> to vector<2x128xf32>
    %100 = arith.addf %97, %99 : vector<2x128xf32>
    %c0_47 = arith.constant 0 : index
    %c0_48 = arith.constant 0 : index
    %101 = vector.load %arg6[%c0_47, %c0_48] : memref<2x128xf32, #tpu.memory_space<vmem>>, vector<2x128xf32>
    tpu.vector_store %arg6[%c0_47, %c0_48], %100 {strides = array<i32>} : memref<2x128xf32, #tpu.memory_space<vmem>>, vector<2x128xf32>,
    return
  }
  func.func @transform_0(%arg0: i32) -> (i32, i32, i32) {
    %c0_i32 = arith.constant 0 : i32
    %c0_i32_0 = arith.constant 0 : i32
    %c0_i32_1 = arith.constant 0 : i32
    return %c0_i32, %arg0, %c0_i32_0 : i32, i32, i32
  }
  func.func @transform_1(%arg0: i32) -> (i32, i32) {
    %c0_i32 = arith.constant 0 : i32
    %c0_i32_0 = arith.constant 0 : i32
    %c0_i32_1 = arith.constant 0 : i32
    return %c0_i32, %c0_i32_0 : i32, i32
  }
  func.func @transform_2(%arg0: i32) -> (i32, i32) {
    %c0_i32 = arith.constant 0 : i32
    %c0_i32_0 = arith.constant 0 : i32
    %c0_i32_1 = arith.constant 0 : i32
    return %c0_i32, %c0_i32_0 : i32, i32
  }
  func.func @transform_3(%arg0: i32) -> (i32, i32) {
    %c0_i32 = arith.constant 0 : i32
    %c0_i32_0 = arith.constant 0 : i32
    %c0_i32_1 = arith.constant 0 : i32
    return %c0_i32, %c0_i32_0 : i32, i32
  }
  func.func @transform_4(%arg0: i32) -> (i32, i32) {
    %c0_i32 = arith.constant 0 : i32
    %c0_i32_0 = arith.constant 0 : i32
    %c0_i32_1 = arith.constant 0 : i32
    return %c0_i32, %c0_i32_0 : i32, i32
  }
  func.func @transform_5(%arg0: i32) -> (i32, i32) {
    %c0_i32 = arith.constant 0 : i32
    %c0_i32_0 = arith.constant 0 : i32
    return %arg0, %c0_i32 : i32, i32
  }
}

</mosaic_0001>

<llo_original>
// kernel: tpu_custom_call.1
$region0: #{tpu_custom_call.1}
  #allocation0 [shape = 'u32[]', space=smem, size = 0x4, offset = 0x4, fixed_abs, tag = 'smem constant byte address 0x4 - core index']
  #allocation1 [shape = 'u32[144,128]{1,0:T(1,128)}', space=vmem, size = 0x12000, scoped, tag = 'internal scratch']
  %s0 = inlined_call_operand.hbm [shape: bf16[2,2,128], index: 0, kind: input, shape index: {}]
  %s1 = inlined_call_operand.hbm [shape: bf16[128,128], index: 1, kind: input, shape index: {}]
  %s2 = inlined_call_operand.vmem [shape: f32[1,128], index: 2, kind: input, shape index: {}]
  %s3 = inlined_call_operand.hbm [shape: bf16[128,128], index: 3, kind: input, shape index: {}]
  %s4 = inlined_call_operand.vmem [shape: f32[1,128], index: 4, kind: input, shape index: {}]
  %s5 = inlined_call_operand.hbm [shape: f32[2,128], index: 5, kind: output, shape index: {}]
  %s6 = sld [smem:[#allocation0]]
  $region42: #{tpu_custom_call.1} parent=0
    _
  %s8 = ssub.s32 1, %s6
  %s9 = scalar_select 0, %s8, %s6
  $region1: #{tpu_custom_call.1} parent=0
    #allocation2 [shape = 'u8[1024]{0}', space=vmem, size = 0x400, scoped, tag = 'input window, operand 0, single buffered']
    #allocation3 [shape = 's32[1]{0}', space=sflag, size = 0x4, scoped, tag = 'scoped memory for tpu_custom_call.1']
    #allocation4 [shape = 's32[1]{0}', space=sflag, size = 0x4, scoped, tag = 'scoped memory for tpu_custom_call.1']
    #allocation5 [shape = 'u8[32768]{0}', space=vmem, size = 0x8000, scoped, tag = 'input window, operand 1, single buffered']
    #allocation6 [shape = 's32[1]{0}', space=sflag, size = 0x4, scoped, tag = 'scoped memory for tpu_custom_call.1']
    #allocation7 [shape = 'u8[32768]{0}', space=vmem, size = 0x8000, scoped, tag = 'input window, operand 3, single buffered']
    #allocation8 [shape = 'u8[1024]{0}', space=vmem, size = 0x400, scoped, tag = 'output window, operand 0, single buffered']
    %10 = vsyncpa [#allocation3], 0
    %11 = vsyncpa [#allocation6], 0
    %12 = vsyncpa [#allocation4], 0
    // Predicated region
    $region2: #{tpu_custom_call.1} parent=1 // pred_check
      _
    $region3: #{tpu_custom_call.1} parent=1 // pred_check_branch
      %14 = sbr.rel (0) target = $region5
    $region4: #{tpu_custom_call.1} parent=1 // pred_region
      %s16 = ssub.s32 32, 32
      %17 = vsyncadd [#allocation3], %s16
      %s18 = sshll.u32 [#allocation2], 4
      %s19 = int_to_ptr.vmem [resolvable:$true] %s18
      %24 = dma.hbm_to_vmem [thread:$0]  %s0, 32, %s19, [#allocation3], 16, 16, 1
    $region5: #{tpu_custom_call.1} parent=1 // pred_fallthru
      _
    // Predicated region
    $region6: #{tpu_custom_call.1} parent=1 // pred_check
      _
    $region7: #{tpu_custom_call.1} parent=1 // pred_check_branch
      %26 = sbr.rel (0) target = $region9
    $region8: #{tpu_custom_call.1} parent=1 // pred_region
      %s28 = ssub.s32 1024, 1024
      %29 = vsyncadd [#allocation6], %s28
      %s30 = sshll.u32 [#allocation5], 4
      %s31 = int_to_ptr.vmem [resolvable:$true] %s30
      %36 = dma.hbm_to_vmem [thread:$0]  %s1, 1024, %s31, [#allocation6], 64, 64, 4
    $region9: #{tpu_custom_call.1} parent=1 // pred_fallthru
      _
    // Predicated region
    $region10: #{tpu_custom_call.1} parent=1 // pred_check
      _
    $region11: #{tpu_custom_call.1} parent=1 // pred_check_branch
      %38 = sbr.rel (0) target = $region13
    $region12: #{tpu_custom_call.1} parent=1 // pred_region
      _
    $region13: #{tpu_custom_call.1} parent=1 // pred_fallthru
      _
    // Predicated region
    $region14: #{tpu_custom_call.1} parent=1 // pred_check
      _
    $region15: #{tpu_custom_call.1} parent=1 // pred_check_branch
      %40 = sbr.rel (0) target = $region17
    $region16: #{tpu_custom_call.1} parent=1 // pred_region
      %s42 = ssub.s32 1024, 1024
      %43 = vsyncadd [#allocation6], %s42
      %s44 = sshll.u32 [#allocation7], 4
      %s45 = int_to_ptr.vmem [resolvable:$true] %s44
      %50 = dma.hbm_to_vmem [thread:$0]  %s3, 1024, %s45, [#allocation6], 64, 64, 4
    $region17: #{tpu_custom_call.1} parent=1 // pred_fallthru
      _
    // Predicated region
    $region18: #{tpu_custom_call.1} parent=1 // pred_check
      _
    $region19: #{tpu_custom_call.1} parent=1 // pred_check_branch
      %52 = sbr.rel (0) target = $region21
    $region20: #{tpu_custom_call.1} parent=1 // pred_region
      _
    $region21: #{tpu_custom_call.1} parent=1 // pred_fallthru
      _
    // Predicated region
    $region22: #{tpu_custom_call.1} parent=1 // pred_check
      _
    $region23: #{tpu_custom_call.1} parent=1 // pred_check_branch
      %54 = sbr.rel (0) target = $region25
    $region24: #{tpu_custom_call.1} parent=1 // pred_region
      %55 = dma.done [#allocation3], 32
    $region25: #{tpu_custom_call.1} parent=1 // pred_fallthru
      _
    // Predicated region
    $region26: #{tpu_custom_call.1} parent=1 // pred_check
      _
    $region27: #{tpu_custom_call.1} parent=1 // pred_check_branch
      %57 = sbr.rel (0) target = $region29
    $region28: #{tpu_custom_call.1} parent=1 // pred_region
      %58 = dma.done [#allocation6], 1024
    $region29: #{tpu_custom_call.1} parent=1 // pred_fallthru
      _
    // Predicated region
    $region30: #{tpu_custom_call.1} parent=1 // pred_check
      _
    $region31: #{tpu_custom_call.1} parent=1 // pred_check_branch
      %60 = sbr.rel (0) target = $region33
    $region32: #{tpu_custom_call.1} parent=1 // pred_region
      %61 = dma.done [#allocation6], 1024
    $region33: #{tpu_custom_call.1} parent=1 // pred_fallthru
      _
    %v63 = vld [vmem:[#allocation2] sm:$0x1]
    %v64 = vld [vmem:[#allocation5] sm:$0xf]
    %v65 = vld [vmem:[#allocation5 + $0x4] sm:$0xf]
    %v66 = vld [vmem:[#allocation5 + $0x8] sm:$0xf]
    %v67 = vld [vmem:[#allocation5 + $0xc] sm:$0xf]
    %v68 = vld [vmem:[#allocation5 + $0x10] sm:$0xf]
    %v69 = vld [vmem:[#allocation5 + $0x14] sm:$0xf]
    %v70 = vld [vmem:[#allocation5 + $0x18] sm:$0xf]
    %v71 = vld [vmem:[#allocation5 + $0x1c] sm:$0xf]
    %v72 = vld [vmem:[#allocation5 + $0x20] sm:$0xf]
    %v73 = vld [vmem:[#allocation5 + $0x24] sm:$0xf]
    %v74 = vld [vmem:[#allocation5 + $0x28] sm:$0xf]
    %v75 = vld [vmem:[#allocation5 + $0x2c] sm:$0xf]
    %v76 = vld [vmem:[#allocation5 + $0x30] sm:$0xf]
    %v77 = vld [vmem:[#allocation5 + $0x34] sm:$0xf]
    %v78 = vld [vmem:[#allocation5 + $0x38] sm:$0xf]
    %v79 = vld [vmem:[#allocation5 + $0x3c] sm:$0xf]
    %v80 = vld [vmem:[%s2] sm:$0x1]
    %v82 = vlaneseq
    %v83 = vshrl.u32 %v82, 7
    %v84 = vsub.s32 0, %v83
    %v85 = vrot.slane %v80, %v84
    %v103 = vunpack.c.l.b16 %v64
    %v104 = vunpack.c.l.b16 %v65
    %v105 = vunpack.c.l.b16 %v66
    %v106 = vunpack.c.l.b16 %v67
    %v107 = vunpack.c.l.b16 %v68
    %v108 = vunpack.c.l.b16 %v69
    %v109 = vunpack.c.l.b16 %v70
    %v110 = vunpack.c.l.b16 %v71
    %v111 = vunpack.c.l.b16 %v72
    %v112 = vunpack.c.l.b16 %v73
    %v113 = vunpack.c.l.b16 %v74
    %v114 = vunpack.c.l.b16 %v75
    %v115 = vunpack.c.l.b16 %v76
    %v116 = vunpack.c.l.b16 %v77
    %v117 = vunpack.c.l.b16 %v78
    %v118 = vunpack.c.l.b16 %v79
    %v119 = vpack.c.b16 %v104, %v103
    %v120 = vpack.c.b16 %v106, %v105
    %v121 = vpack.c.b16 %v108, %v107
    %v122 = vpack.c.b16 %v110, %v109
    %v123 = vpack.c.b16 %v112, %v111
    %v124 = vpack.c.b16 %v114, %v113
    %v125 = vpack.c.b16 %v116, %v115
    %v126 = vpack.c.b16 %v118, %v117
    %135 = vmatprep.subr.bf16.mxu0 0
    %136 = vmatpush1.bf16.msra.mxu0 %v119
    %137 = vmatprep.subr.bf16.mxu0 0
    %138 = vmatpush1.bf16.msra.mxu0 %v120
    %139 = vmatprep.subr.bf16.mxu0 0
    %140 = vmatpush1.bf16.msra.mxu0 %v121
    %141 = vmatprep.subr.bf16.mxu0 0
    %142 = vmatpush1.bf16.msra.mxu0 %v122
    %143 = vmatprep.subr.bf16.mxu0 0
    %144 = vmatpush1.bf16.msra.mxu0 %v123
    %145 = vmatprep.subr.bf16.mxu0 0
    %146 = vmatpush1.bf16.msra.mxu0 %v124
    %147 = vmatprep.subr.bf16.mxu0 0
    %148 = vmatpush1.bf16.msra.mxu0 %v125
    %149 = vmatprep.subr.bf16.mxu0 0
    %150 = vmatpush1.bf16.msra.mxu0 %v126
    %151 = vmatprep.subr.bf16.mxu0 0
    %152 = vmatpush1.bf16.msra.mxu0 0
    %153 = vmatprep.subr.bf16.mxu0 0
    %154 = vmatpush1.bf16.msra.mxu0 0
    %155 = vmatprep.subr.bf16.mxu0 0
    %156 = vmatpush1.bf16.msra.mxu0 0
    %157 = vmatprep.subr.bf16.mxu0 0
    %158 = vmatpush1.bf16.msra.mxu0 0
    %159 = vmatprep.subr.bf16.mxu0 0
    %160 = vmatpush1.bf16.msra.mxu0 0
    %161 = vmatprep.subr.bf16.mxu0 0
    %162 = vmatpush1.bf16.msra.mxu0 0
    %163 = vmatprep.subr.bf16.mxu0 0
    %164 = vmatpush1.bf16.msra.mxu0 0
    %165 = vmatprep.subr.bf16.mxu0 0
    %166 = vmatpush1.bf16.msra.mxu0 0
    %167 = vmatprep.mubr.bf16.mxu0 0
    %168 = vmatmul.mubr.bf16.gmra.mrb[0].mxu0 %v63
    %v169 = vpop.f32.mrb[0].mxu0
    %v170 = vadd.f32 %v85, %v169
    %v171 = vpop.f32.mrb[0].mxu0
    %v172 = vpop.f32.mrb[0].mxu0
    %v173 = vpop.f32.mrb[0].mxu0
    %174 = vdwg.mxu0
    %v175 = vmul.f32 %v170, 0.5
    %v176 = vmul.f32 %v170, 0.70710677
    %v177 = vand.u32 2147483647, %v176
    %v178 = vmul.f32 %v177, 0.3275911
    %v179 = vadd.f32 %v178, 1.0
    %v180 = vrcp.pop %v179
    %v181 = vmul.f32 %v180, 1.0614054
    %v182 = vadd.f32 %v181, -1.4531521
    %v183 = vmul.f32 %v182, %v180
    %v184 = vadd.f32 %v183, 1.4214138
    %v185 = vmul.f32 %v184, %v180
    %v186 = vadd.f32 %v185, -0.28449672
    %v187 = vmul.f32 %v186, %v180
    %v188 = vadd.f32 %v187, 0.2548296
    %v189 = vmul.f32 %v188, %v180
    %v190 = vsub.f32 0.0, %v177
    %v191 = vmul.f32 %v190, %v177
    %v192 = vmul.f32 %v191, 1.442695
    %v193 = vpow.pop %v192
    %v194 = vmul.f32 %v189, %v193
    %v195 = vsub.f32 1.0, %v194
    %vm196 = vcmp.lt.f32.partialorder %v176, 0.0
    %v197 = vsub.f32 0.0, %v195
    %v198 = vsel %vm196, %v197, %v195
    %v199 = vadd.f32 %v198, 1.0
    %v200 = vmul.f32 %v175, %v199
    %s201 = scalar_lea.vmem [#allocation2], 1
    %v202 = vld [vmem:[%s201] sm:$0x1]
    %203 = vmatprep.subr.bf16.mxu0 0
    %204 = vmatpush1.bf16.msra.mxu0 %v119
    %205 = vmatprep.subr.bf16.mxu0 0
    %206 = vmatpush1.bf16.msra.mxu0 %v120
    %207 = vmatprep.subr.bf16.mxu0 0
    %208 = vmatpush1.bf16.msra.mxu0 %v121
    %209 = vmatprep.subr.bf16.mxu0 0
    %210 = vmatpush1.bf16.msra.mxu0 %v122
    %211 = vmatprep.subr.bf16.mxu0 0
    %212 = vmatpush1.bf16.msra.mxu0 %v123
    %213 = vmatprep.subr.bf16.mxu0 0
    %214 = vmatpush1.bf16.msra.mxu0 %v124
    %215 = vmatprep.subr.bf16.mxu0 0
    %216 = vmatpush1.bf16.msra.mxu0 %v125
    %217 = vmatprep.subr.bf16.mxu0 0
    %218 = vmatpush1.bf16.msra.mxu0 %v126
    %219 = vmatprep.subr.bf16.mxu0 0
    %220 = vmatpush1.bf16.msra.mxu0 0
    %221 = vmatprep.subr.bf16.mxu0 0
    %222 = vmatpush1.bf16.msra.mxu0 0
    %223 = vmatprep.subr.bf16.mxu0 0
    %224 = vmatpush1.bf16.msra.mxu0 0
    %225 = vmatprep.subr.bf16.mxu0 0
    %226 = vmatpush1.bf16.msra.mxu0 0
    %227 = vmatprep.subr.bf16.mxu0 0
    %228 = vmatpush1.bf16.msra.mxu0 0
    %229 = vmatprep.subr.bf16.mxu0 0
    %230 = vmatpush1.bf16.msra.mxu0 0
    %231 = vmatprep.subr.bf16.mxu0 0
    %232 = vmatpush1.bf16.msra.mxu0 0
    %233 = vmatprep.subr.bf16.mxu0 0
    %234 = vmatpush1.bf16.msra.mxu0 0
    %235 = vmatprep.mubr.bf16.mxu0 0
    %236 = vmatmul.mubr.bf16.gmra.mrb[0].mxu0 %v202
    %v237 = vpop.f32.mrb[0].mxu0
    %v238 = vadd.f32 %v85, %v237
    %v239 = vpop.f32.mrb[0].mxu0
    %v240 = vpop.f32.mrb[0].mxu0
    %v241 = vpop.f32.mrb[0].mxu0
    %242 = vdwg.mxu0
    %v243 = vmul.f32 %v238, 0.5
    %v244 = vmul.f32 %v238, 0.70710677
    %v245 = vand.u32 2147483647, %v244
    %v246 = vmul.f32 %v245, 0.3275911
    %v247 = vadd.f32 %v246, 1.0
    %v248 = vrcp.pop %v247
    %v249 = vmul.f32 %v248, 1.0614054
    %v250 = vadd.f32 %v249, -1.4531521
    %v251 = vmul.f32 %v250, %v248
    %v252 = vadd.f32 %v251, 1.4214138
    %v253 = vmul.f32 %v252, %v248
    %v254 = vadd.f32 %v253, -0.28449672
    %v255 = vmul.f32 %v254, %v248
    %v256 = vadd.f32 %v255, 0.2548296
    %v257 = vmul.f32 %v256, %v248
    %v258 = vsub.f32 0.0, %v245
    %v259 = vmul.f32 %v258, %v245
    %v260 = vmul.f32 %v259, 1.442695
    %v261 = vpow.pop %v260
    %v262 = vmul.f32 %v257, %v261
    %v263 = vsub.f32 1.0, %v262
    %vm264 = vcmp.lt.f32.partialorder %v244, 0.0
    %v265 = vsub.f32 0.0, %v263
    %v266 = vsel %vm264, %v265, %v263
    %v267 = vadd.f32 %v266, 1.0
    %v268 = vmul.f32 %v243, %v267
    %v269 = vadd.f32 %v200, %v268
    %v270 = vmul.f32 %v269, 0.5
    %v271 = vpack.c.bf16 %v270, %v270
    %v272 = vld [vmem:[#allocation7] sm:$0xf]
    %v273 = vld [vmem:[#allocation7 + $0x4] sm:$0xf]
    %v274 = vld [vmem:[#allocation7 + $0x8] sm:$0xf]
    %v275 = vld [vmem:[#allocation7 + $0xc] sm:$0xf]
    %v276 = vld [vmem:[#allocation7 + $0x10] sm:$0xf]
    %v277 = vld [vmem:[#allocation7 + $0x14] sm:$0xf]
    %v278 = vld [vmem:[#allocation7 + $0x18] sm:$0xf]
    %v279 = vld [vmem:[#allocation7 + $0x1c] sm:$0xf]
    %v280 = vld [vmem:[#allocation7 + $0x20] sm:$0xf]
    %v281 = vld [vmem:[#allocation7 + $0x24] sm:$0xf]
    %v282 = vld [vmem:[#allocation7 + $0x28] sm:$0xf]
    %v283 = vld [vmem:[#allocation7 + $0x2c] sm:$0xf]
    %v284 = vld [vmem:[#allocation7 + $0x30] sm:$0xf]
    %v285 = vld [vmem:[#allocation7 + $0x34] sm:$0xf]
    %v286 = vld [vmem:[#allocation7 + $0x38] sm:$0xf]
    %v287 = vld [vmem:[#allocation7 + $0x3c] sm:$0xf]
    %v288 = vld [vmem:[%s4] sm:$0x1]
    %v290 = vlaneseq
    %v291 = vshrl.u32 %v290, 7
    %v292 = vsub.s32 0, %v291
    %v293 = vrot.slane %v288, %v292
    %v311 = vunpack.c.l.b16 %v272
    %v312 = vunpack.c.l.b16 %v273
    %v313 = vunpack.c.l.b16 %v274
    %v314 = vunpack.c.l.b16 %v275
    %v315 = vunpack.c.l.b16 %v276
    %v316 = vunpack.c.l.b16 %v277
    %v317 = vunpack.c.l.b16 %v278
    %v318 = vunpack.c.l.b16 %v279
    %v319 = vunpack.c.l.b16 %v280
    %v320 = vunpack.c.l.b16 %v281
    %v321 = vunpack.c.l.b16 %v282
    %v322 = vunpack.c.l.b16 %v283
    %v323 = vunpack.c.l.b16 %v284
    %v324 = vunpack.c.l.b16 %v285
    %v325 = vunpack.c.l.b16 %v286
    %v326 = vunpack.c.l.b16 %v287
    %v327 = vpack.c.b16 %v312, %v311
    %v328 = vpack.c.b16 %v314, %v313
    %v329 = vpack.c.b16 %v316, %v315
    %v330 = vpack.c.b16 %v318, %v317
    %v331 = vpack.c.b16 %v320, %v319
    %v332 = vpack.c.b16 %v322, %v321
    %v333 = vpack.c.b16 %v324, %v323
    %v334 = vpack.c.b16 %v326, %v325
    %343 = vmatprep.subr.bf16.mxu0 0
    %344 = vmatpush1.bf16.msra.mxu0 %v327
    %345 = vmatprep.subr.bf16.mxu0 0
    %346 = vmatpush1.bf16.msra.mxu0 %v328
    %347 = vmatprep.subr.bf16.mxu0 0
    %348 = vmatpush1.bf16.msra.mxu0 %v329
    %349 = vmatprep.subr.bf16.mxu0 0
    %350 = vmatpush1.bf16.msra.mxu0 %v330
    %351 = vmatprep.subr.bf16.mxu0 0
    %352 = vmatpush1.bf16.msra.mxu0 %v331
    %353 = vmatprep.subr.bf16.mxu0 0
    %354 = vmatpush1.bf16.msra.mxu0 %v332
    %355 = vmatprep.subr.bf16.mxu0 0
    %356 = vmatpush1.bf16.msra.mxu0 %v333
    %357 = vmatprep.subr.bf16.mxu0 0
    %358 = vmatpush1.bf16.msra.mxu0 %v334
    %359 = vmatprep.subr.bf16.mxu0 0
    %360 = vmatpush1.bf16.msra.mxu0 0
    %361 = vmatprep.subr.bf16.mxu0 0
    %362 = vmatpush1.bf16.msra.mxu0 0
    %363 = vmatprep.subr.bf16.mxu0 0
    %364 = vmatpush1.bf16.msra.mxu0 0
    %365 = vmatprep.subr.bf16.mxu0 0
    %366 = vmatpush1.bf16.msra.mxu0 0
    %367 = vmatprep.subr.bf16.mxu0 0
    %368 = vmatpush1.bf16.msra.mxu0 0
    %369 = vmatprep.subr.bf16.mxu0 0
    %370 = vmatpush1.bf16.msra.mxu0 0
    %371 = vmatprep.subr.bf16.mxu0 0
    %372 = vmatpush1.bf16.msra.mxu0 0
    %373 = vmatprep.subr.bf16.mxu0 0
    %374 = vmatpush1.bf16.msra.mxu0 0
    %375 = vmatprep.mubr.bf16.mxu0 0
    %376 = vmatmul.mubr.bf16.gmra.mrb[0].mxu0 %v271
    %v377 = vpop.f32.mrb[0].mxu0
    %v378 = vadd.f32 %v293, %v377
    %v379 = vpop.f32.mrb[0].mxu0
    %v380 = vpop.f32.mrb[0].mxu0
    %v381 = vpop.f32.mrb[0].mxu0
    %382 = vdwg.mxu0
    %383 = vst [vmem:[#allocation8] sm:$0x3] %v378
    // Predicated region
    $region34: #{tpu_custom_call.1} parent=1 // pred_check
      _
    $region35: #{tpu_custom_call.1} parent=1 // pred_check_branch
      %385 = sbr.rel (0) target = $region37
    $region36: #{tpu_custom_call.1} parent=1 // pred_region
      %s387 = ssub.s32 32, 32
      %388 = vsyncadd [#allocation4], %s387
      %s390 = sshll.u32 [#allocation8], 4
      %s391 = int_to_ptr.vmem [resolvable:$true] %s390
      %393 = dma.vmem_to_hbm [thread:$0]  %s391, 32, %s5, [#allocation4]
    $region37: #{tpu_custom_call.1} parent=1 // pred_fallthru
      _
    // Predicated region
    $region38: #{tpu_custom_call.1} parent=1 // pred_check
      _
    $region39: #{tpu_custom_call.1} parent=1 // pred_check_branch
      %395 = sbr.rel (0) target = $region41
    $region40: #{tpu_custom_call.1} parent=1 // pred_region
      %396 = dma.done [#allocation4], 32
    $region41: #{tpu_custom_call.1} parent=1 // pred_fallthru
      _
    %397 = vsyncpa [#allocation3], 1
    %398 = vsyncpa [#allocation6], 1
    %399 = vsyncpa [#allocation4], 1

</llo_original>
